<compile_context>
chip_gen: v5e
topology: v5e:2x2
jax: 0.10.0
libtpu: 0.0.40
codegen_flags: <defaults>
</compile_context>

<pallas_src>
import functools

import jax
import jax.numpy as jnp
import numpy as np
from jax import lax
from jax.experimental import pallas as pl
from jax.experimental.pallas import tpu as pltpu

EPS = 1e-5  # PyTorch InstanceNorm2d default eps


def _conv_insnorm_relu_kernel(win_ref, w_ref, mask_ref, out_ref, conv_ref, *,
                              offsets, tile, n_tiles, inv_hw,
                              apply_insn, apply_relu):
    # win_ref : (R, wlen)             bf16, lane window (tile + halo) for this (image, tile)
    # w_ref   : (n_taps, Cout, R)     bf16, per-tap weight matrices
    # mask_ref: (n_tiles, 1, tile)    f32, 1.0 on valid output lanes, 0.0 on padding
    # out_ref : (Cout, l_out)         f32, resident across the lane-tile grid axis
    # conv_ref: (n_tiles, Cout, tile) f32 VMEM scratch with raw conv outputs
    t = pl.program_id(1)
    cout = out_ref.shape[0]

    # Conv for this lane tile: kernel taps are static lane shifts of the small resident
    # window (no HBM im2col); accumulate in f32.
    acc = jnp.dot(w_ref[0], win_ref[:, offsets[0]:offsets[0] + tile],
                  preferred_element_type=jnp.float32)
    for i, off in enumerate(offsets[1:], start=1):
        acc = acc + jnp.dot(w_ref[i], win_ref[:, off:off + tile],
                            preferred_element_type=jnp.float32)
    conv_ref[t] = acc

    # Epilogue on the last lane tile of this image: masked two-pass instance norm over
    # the whole (VMEM-resident) conv output, then ReLU, then lane-dense aligned stores.
    @pl.when(t == n_tiles - 1)
    def _finalize():
        if apply_insn:
            s = jnp.zeros((cout, 1), jnp.float32)
            for i in range(n_tiles):
                s = s + jnp.sum(conv_ref[i] * mask_ref[i], axis=-1, keepdims=True)
            mean = s * inv_hw
            v = jnp.zeros((cout, 1), jnp.float32)
            for i in range(n_tiles):
                d = (conv_ref[i] - mean) * mask_ref[i]
                v = v + jnp.sum(d * d, axis=-1, keepdims=True)
            rstd = lax.rsqrt(v * inv_hw + EPS)
        for i in range(n_tiles):
            z = conv_ref[i]
            if apply_insn:
                z = (z - mean) * rstd
            if apply_relu:
                z = jnp.maximum(z, 0.0)
            out_ref[:, i * tile:(i + 1) * tile] = z


def _round_up(x, m):
    return (x + m - 1) // m * m


def _pick_tile(l_raw):
    """Lane-tile size: multiple of 128, <= 2048, aiming for several grid steps."""
    l128 = _round_up(l_raw, 128)
    return int(min(2048, max(128, _round_up(l128 // 8, 128))))


def basic_conv_forward(x_nchw, weight, *, stride=1, padding=0, dilation=1,
                       relu=True, insn=True):
    """BasicConv.forward for groups=1, bias=False.  x_nchw: (N, Cin, H, W)."""
    N, Cin, H, W = x_nchw.shape
    Cout, Cin_w, K, K2 = weight.shape
    assert Cin_w == Cin and K == K2

    xp = jnp.pad(x_nchw.astype(jnp.float32),
                 ((0, 0), (0, 0), (padding, padding), (padding, padding)))
    Hp, Wp = H + 2 * padding, W + 2 * padding
    Ho = (Hp - dilation * (K - 1) - 1) // stride + 1
    Wo = (Wp - dilation * (K - 1) - 1) // stride + 1
    HW = Ho * Wo
    w = weight.astype(jnp.float32)

    if stride == 1:
        # Ship only the padded image, flattened on lanes.  The conv is evaluated on the
        # full padded lane grid; taps are lane shifts of ki*d*Wp + kj*d.  Invalid lanes
        # (right/bottom apron + 128-alignment padding) are masked out of the norm stats
        # and sliced off after the call.
        offsets = tuple(ki * dilation * Wp + kj * dilation
                        for ki in range(K) for kj in range(K))
        slab = xp.reshape(N, Cin, Hp * Wp)
        w_taps = jnp.transpose(w, (2, 3, 0, 1)).reshape(K * K, Cout, Cin)
        l_raw = Hp * Wp
    else:
        # Fallback for stride > 1: full im2col in the wrapper (single tap).
        offsets = (0,)
        patches = []
        for ki in range(K):
            for kj in range(K):
                patches.append(
                    xp[:, :, ki * dilation: ki * dilation + stride * Ho: stride,
                          kj * dilation: kj * dilation + stride * Wo: stride])
        slab = jnp.stack(patches, axis=1).reshape(N, K * K * Cin, HW)
        w_taps = jnp.transpose(w, (0, 2, 3, 1)).reshape(1, Cout, K * K * Cin)
        l_raw = HW

    R = slab.shape[1]
    n_taps = len(offsets)
    max_off = max(offsets)

    tile = _pick_tile(l_raw)
    l_out = _round_up(l_raw, tile)
    n_tiles = l_out // tile
    wlen = tile + max_off

    # bf16 at the HBM boundary (in-kernel accumulation stays f32).
    slab = slab.astype(jnp.bfloat16)
    slab = jnp.pad(slab, ((0, 0), (0, 0), (0, l_out + max_off - l_raw)))
    # Overlapping lane windows (halo = max_off) so every grid step gets a small,
    # self-contained block and the kernel never needs dynamic lane offsets.
    windows = jnp.stack(
        [slab[:, :, t * tile: t * tile + wlen] for t in range(n_tiles)], axis=1)
    w_taps = w_taps.astype(jnp.bfloat16)

    # 0/1 mask of valid output lanes on the padded, 128-aligned lane grid.
    p = np.arange(l_out)
    if stride == 1:
        valid = ((p // Wp) < Ho) & ((p % Wp) < Wo)
    else:
        valid = p < HW
    mask = jnp.asarray(valid.reshape(n_tiles, 1, tile).astype(np.float32))

    kernel = functools.partial(
        _conv_insnorm_relu_kernel, offsets=offsets, tile=tile, n_tiles=n_tiles,
        inv_hw=1.0 / float(HW), apply_insn=insn, apply_relu=relu)

    out = pl.pallas_call(
        kernel,
        out_shape=jax.ShapeDtypeStruct((N, Cout, l_out), jnp.float32),
        grid_spec=pltpu.PrefetchScalarGridSpec(
            num_scalar_prefetch=0,
            grid=(N, n_tiles),
            in_specs=[
                pl.BlockSpec((pl.Squeezed(), pl.Squeezed(), R, wlen),
                             lambda n, t: (n, t, 0, 0)),
                pl.BlockSpec((n_taps, Cout, R), lambda n, t: (0, 0, 0)),
                pl.BlockSpec((n_tiles, 1, tile), lambda n, t: (0, 0, 0)),
            ],
            out_specs=pl.BlockSpec((pl.Squeezed(), Cout, l_out),
                                   lambda n, t: (n, 0, 0)),
            scratch_shapes=[pltpu.VMEM((n_tiles, Cout, tile), jnp.float32)],
        ),
        compiler_params=pltpu.CompilerParams(
            dimension_semantics=("parallel", "arbitrary"),
        ),
    )(windows, w_taps, mask)

    if stride == 1:
        y = out[:, :, :Hp * Wp].reshape(N, Cout, Hp, Wp)[:, :, :Ho, :Wo]
    else:
        y = out[:, :, :HW].reshape(N, Cout, Ho, Wo)
    return y.astype(x_nchw.dtype)


def _reference(x_nchw, weight, *, stride, padding, dilation, relu, insn):
    """Pure-JAX reference (mirrors PyTorch semantics) for verification."""
    y = lax.conv_general_dilated(
        x_nchw.astype(jnp.float32), weight.astype(jnp.float32),
        window_strides=(stride, stride),
        padding=[(padding, padding), (padding, padding)],
        rhs_dilation=(dilation, dilation),
        dimension_numbers=("NCHW", "OIHW", "NCHW"))
    if insn:
        mean = jnp.mean(y, axis=(2, 3), keepdims=True)
        var = jnp.mean((y - mean) ** 2, axis=(2, 3), keepdims=True)
        y = (y - mean) * lax.rsqrt(var + EPS)
    if relu:
        y = jnp.maximum(y, 0.0)
    return y


if __name__ == "__main__":
    # BasicConv(in_planes=4, out_planes=8, kernel_size=3, stride=1, padding=1)
    N, Cin, H, W = 2, 4, 16, 16
    Cout, K, stride, padding, dilation = 8, 3, 1, 1, 1

    key = jax.random.PRNGKey(0)
    kx, kw = jax.random.split(key)
    x = jax.random.normal(kx, (N, Cin, H, W), dtype=jnp.float32)
    fan_in = Cin * K * K
    bound = 1.0 / np.sqrt(fan_in)
    weight = jax.random.uniform(kw, (Cout, Cin, K, K), dtype=jnp.float32,
                                minval=-bound, maxval=bound)

    out = basic_conv_forward(x, weight, stride=stride, padding=padding,
                             dilation=dilation, relu=True, insn=True)
    out = jax.block_until_ready(out)

    ref = _reference(x, weight, stride=stride, padding=padding,
                     dilation=dilation, relu=True, insn=True)
    # Tolerance loosened vs. the all-f32 version because the conv inputs/weights are
    # fed to the MXU in bf16 (accumulation and normalization remain f32).
    np.testing.assert_allclose(np.asarray(out), np.asarray(ref),
                               rtol=2e-2, atol=2e-2)
    print("KERNEL_OK")
</pallas_src>

<mosaic_0001>
module attributes {stable_mosaic.version = 11 : i64} {
  func.func @_conv_insnorm_relu_kernel(%arg0: i32, %arg1: i32, %arg2: memref<1x1x4x166xbf16, #tpu.memory_space<vmem>>, %arg3: memref<9x8x4xbf16, #tpu.memory_space<vmem>>, %arg4: memref<3x1x128xf32, #tpu.memory_space<vmem>>, %arg5: memref<1x8x384xf32, #tpu.memory_space<vmem>>, %arg6: memref<3x8x128xf32, #tpu.memory_space<vmem>>) attributes {dimension_semantics = [#tpu.dimension_semantics<parallel>, #tpu.dimension_semantics<arbitrary>], iteration_bounds = array<i64: 2, 3>, scalar_prefetch = 0 : i64, scratch_operands = 1 : i64, tpu.core_type = #tpu.core_type<tc>, window_params = [{transform_indices = @transform_0, window_bounds = array<i64: 1, 1, 4, 166>}, {pipeline_mode = #tpu.pipeline_mode<synchronous>, transform_indices = @transform_1, window_bounds = array<i64: 9, 8, 4>}, {pipeline_mode = #tpu.pipeline_mode<synchronous>, transform_indices = @transform_2, window_bounds = array<i64: 3, 1, 128>}, {transform_indices = @transform_3, window_bounds = array<i64: 1, 8, 384>}]} {
    %c0 = arith.constant 0 : index
    %c0_0 = arith.constant 0 : index
    %c0_1 = arith.constant 0 : index
    %0 = vector.load %arg3[%c0, %c0_0, %c0_1] : memref<9x8x4xbf16, #tpu.memory_space<vmem>>, vector<1x8x4xbf16>
    %1 = vector.shape_cast %0 : vector<1x8x4xbf16> to vector<8x4xbf16>
    %c0_2 = arith.constant 0 : index
    %c0_3 = arith.constant 0 : index
    %c0_4 = arith.constant 0 : index
    %c0_5 = arith.constant 0 : index
    %2 = vector.load %arg2[%c0_2, %c0_3, %c0_4, %c0_5] : memref<1x1x4x166xbf16, #tpu.memory_space<vmem>>, vector<1x1x4x128xbf16>
    %3 = vector.shape_cast %2 : vector<1x1x4x128xbf16> to vector<4x128xbf16>
    %cst = arith.constant dense<0.000000e+00> : vector<8x128xf32>
    %4 = tpu.matmul %1, %3, %cst {dimension_numbers = #tpu.dot_dimension_numbers<[1], [0], [0], [1], [0, 0, 1, 1], [], []>} : vector<8x4xbf16>, vector<4x128xbf16>, vector<8x128xf32> -> vector<8x128xf32>
    %c1 = arith.constant 1 : index
    %c0_6 = arith.constant 0 : index
    %c0_7 = arith.constant 0 : index
    %5 = vector.load %arg3[%c1, %c0_6, %c0_7] : memref<9x8x4xbf16, #tpu.memory_space<vmem>>, vector<1x8x4xbf16>
    %6 = vector.shape_cast %5 : vector<1x8x4xbf16> to vector<8x4xbf16>
    %c0_8 = arith.constant 0 : index
    %c0_9 = arith.constant 0 : index
    %c0_10 = arith.constant 0 : index
    %c1_11 = arith.constant 1 : index
    %7 = vector.load %arg2[%c0_8, %c0_9, %c0_10, %c1_11] : memref<1x1x4x166xbf16, #tpu.memory_space<vmem>>, vector<1x1x4x128xbf16>
    %8 = vector.shape_cast %7 : vector<1x1x4x128xbf16> to vector<4x128xbf16>
    %cst_12 = arith.constant dense<0.000000e+00> : vector<8x128xf32>
    %9 = tpu.matmul %6, %8, %cst_12 {dimension_numbers = #tpu.dot_dimension_numbers<[1], [0], [0], [1], [0, 0, 1, 1], [], []>} : vector<8x4xbf16>, vector<4x128xbf16>, vector<8x128xf32> -> vector<8x128xf32>
    %10 = arith.addf %4, %9 : vector<8x128xf32>
    %c2 = arith.constant 2 : index
    %c0_13 = arith.constant 0 : index
    %c0_14 = arith.constant 0 : index
    %11 = vector.load %arg3[%c2, %c0_13, %c0_14] : memref<9x8x4xbf16, #tpu.memory_space<vmem>>, vector<1x8x4xbf16>
    %12 = vector.shape_cast %11 : vector<1x8x4xbf16> to vector<8x4xbf16>
    %c0_15 = arith.constant 0 : index
    %c0_16 = arith.constant 0 : index
    %c0_17 = arith.constant 0 : index
    %c2_18 = arith.constant 2 : index
    %13 = vector.load %arg2[%c0_15, %c0_16, %c0_17, %c2_18] : memref<1x1x4x166xbf16, #tpu.memory_space<vmem>>, vector<1x1x4x128xbf16>
    %14 = vector.shape_cast %13 : vector<1x1x4x128xbf16> to vector<4x128xbf16>
    %cst_19 = arith.constant dense<0.000000e+00> : vector<8x128xf32>
    %15 = tpu.matmul %12, %14, %cst_19 {dimension_numbers = #tpu.dot_dimension_numbers<[1], [0], [0], [1], [0, 0, 1, 1], [], []>} : vector<8x4xbf16>, vector<4x128xbf16>, vector<8x128xf32> -> vector<8x128xf32>
    %16 = arith.addf %10, %15 : vector<8x128xf32>
    %c3 = arith.constant 3 : index
    %c0_20 = arith.constant 0 : index
    %c0_21 = arith.constant 0 : index
    %17 = vector.load %arg3[%c3, %c0_20, %c0_21] : memref<9x8x4xbf16, #tpu.memory_space<vmem>>, vector<1x8x4xbf16>
    %18 = vector.shape_cast %17 : vector<1x8x4xbf16> to vector<8x4xbf16>
    %c0_22 = arith.constant 0 : index
    %c0_23 = arith.constant 0 : index
    %c0_24 = arith.constant 0 : index
    %c18 = arith.constant 18 : index
    %19 = vector.load %arg2[%c0_22, %c0_23, %c0_24, %c18] : memref<1x1x4x166xbf16, #tpu.memory_space<vmem>>, vector<1x1x4x128xbf16>
    %20 = vector.shape_cast %19 : vector<1x1x4x128xbf16> to vector<4x128xbf16>
    %cst_25 = arith.constant dense<0.000000e+00> : vector<8x128xf32>
    %21 = tpu.matmul %18, %20, %cst_25 {dimension_numbers = #tpu.dot_dimension_numbers<[1], [0], [0], [1], [0, 0, 1, 1], [], []>} : vector<8x4xbf16>, vector<4x128xbf16>, vector<8x128xf32> -> vector<8x128xf32>
    %22 = arith.addf %16, %21 : vector<8x128xf32>
    %c4 = arith.constant 4 : index
    %c0_26 = arith.constant 0 : index
    %c0_27 = arith.constant 0 : index
    %23 = vector.load %arg3[%c4, %c0_26, %c0_27] : memref<9x8x4xbf16, #tpu.memory_space<vmem>>, vector<1x8x4xbf16>
    %24 = vector.shape_cast %23 : vector<1x8x4xbf16> to vector<8x4xbf16>
    %c0_28 = arith.constant 0 : index
    %c0_29 = arith.constant 0 : index
    %c0_30 = arith.constant 0 : index
    %c19 = arith.constant 19 : index
    %25 = vector.load %arg2[%c0_28, %c0_29, %c0_30, %c19] : memref<1x1x4x166xbf16, #tpu.memory_space<vmem>>, vector<1x1x4x128xbf16>
    %26 = vector.shape_cast %25 : vector<1x1x4x128xbf16> to vector<4x128xbf16>
    %cst_31 = arith.constant dense<0.000000e+00> : vector<8x128xf32>
    %27 = tpu.matmul %24, %26, %cst_31 {dimension_numbers = #tpu.dot_dimension_numbers<[1], [0], [0], [1], [0, 0, 1, 1], [], []>} : vector<8x4xbf16>, vector<4x128xbf16>, vector<8x128xf32> -> vector<8x128xf32>
    %28 = arith.addf %22, %27 : vector<8x128xf32>
    %c5 = arith.constant 5 : index
    %c0_32 = arith.constant 0 : index
    %c0_33 = arith.constant 0 : index
    %29 = vector.load %arg3[%c5, %c0_32, %c0_33] : memref<9x8x4xbf16, #tpu.memory_space<vmem>>, vector<1x8x4xbf16>
    %30 = vector.shape_cast %29 : vector<1x8x4xbf16> to vector<8x4xbf16>
    %c0_34 = arith.constant 0 : index
    %c0_35 = arith.constant 0 : index
    %c0_36 = arith.constant 0 : index
    %c20 = arith.constant 20 : index
    %31 = vector.load %arg2[%c0_34, %c0_35, %c0_36, %c20] : memref<1x1x4x166xbf16, #tpu.memory_space<vmem>>, vector<1x1x4x128xbf16>
    %32 = vector.shape_cast %31 : vector<1x1x4x128xbf16> to vector<4x128xbf16>
    %cst_37 = arith.constant dense<0.000000e+00> : vector<8x128xf32>
    %33 = tpu.matmul %30, %32, %cst_37 {dimension_numbers = #tpu.dot_dimension_numbers<[1], [0], [0], [1], [0, 0, 1, 1], [], []>} : vector<8x4xbf16>, vector<4x128xbf16>, vector<8x128xf32> -> vector<8x128xf32>
    %34 = arith.addf %28, %33 : vector<8x128xf32>
    %c6 = arith.constant 6 : index
    %c0_38 = arith.constant 0 : index
    %c0_39 = arith.constant 0 : index
    %35 = vector.load %arg3[%c6, %c0_38, %c0_39] : memref<9x8x4xbf16, #tpu.memory_space<vmem>>, vector<1x8x4xbf16>
    %36 = vector.shape_cast %35 : vector<1x8x4xbf16> to vector<8x4xbf16>
    %c0_40 = arith.constant 0 : index
    %c0_41 = arith.constant 0 : index
    %c0_42 = arith.constant 0 : index
    %c36 = arith.constant 36 : index
    %37 = vector.load %arg2[%c0_40, %c0_41, %c0_42, %c36] : memref<1x1x4x166xbf16, #tpu.memory_space<vmem>>, vector<1x1x4x128xbf16>
    %38 = vector.shape_cast %37 : vector<1x1x4x128xbf16> to vector<4x128xbf16>
    %cst_43 = arith.constant dense<0.000000e+00> : vector<8x128xf32>
    %39 = tpu.matmul %36, %38, %cst_43 {dimension_numbers = #tpu.dot_dimension_numbers<[1], [0], [0], [1], [0, 0, 1, 1], [], []>} : vector<8x4xbf16>, vector<4x128xbf16>, vector<8x128xf32> -> vector<8x128xf32>
    %40 = arith.addf %34, %39 : vector<8x128xf32>
    %c7 = arith.constant 7 : index
    %c0_44 = arith.constant 0 : index
    %c0_45 = arith.constant 0 : index
    %41 = vector.load %arg3[%c7, %c0_44, %c0_45] : memref<9x8x4xbf16, #tpu.memory_space<vmem>>, vector<1x8x4xbf16>
    %42 = vector.shape_cast %41 : vector<1x8x4xbf16> to vector<8x4xbf16>
    %c0_46 = arith.constant 0 : index
    %c0_47 = arith.constant 0 : index
    %c0_48 = arith.constant 0 : index
    %c37 = arith.constant 37 : index
    %43 = vector.load %arg2[%c0_46, %c0_47, %c0_48, %c37] : memref<1x1x4x166xbf16, #tpu.memory_space<vmem>>, vector<1x1x4x128xbf16>
    %44 = vector.shape_cast %43 : vector<1x1x4x128xbf16> to vector<4x128xbf16>
    %cst_49 = arith.constant dense<0.000000e+00> : vector<8x128xf32>
    %45 = tpu.matmul %42, %44, %cst_49 {dimension_numbers = #tpu.dot_dimension_numbers<[1], [0], [0], [1], [0, 0, 1, 1], [], []>} : vector<8x4xbf16>, vector<4x128xbf16>, vector<8x128xf32> -> vector<8x128xf32>
    %46 = arith.addf %40, %45 : vector<8x128xf32>
    %c8 = arith.constant 8 : index
    %c0_50 = arith.constant 0 : index
    %c0_51 = arith.constant 0 : index
    %47 = vector.load %arg3[%c8, %c0_50, %c0_51] : memref<9x8x4xbf16, #tpu.memory_space<vmem>>, vector<1x8x4xbf16>
    %48 = vector.shape_cast %47 : vector<1x8x4xbf16> to vector<8x4xbf16>
    %c0_52 = arith.constant 0 : index
    %c0_53 = arith.constant 0 : index
    %c0_54 = arith.constant 0 : index
    %c38 = arith.constant 38 : index
    %49 = vector.load %arg2[%c0_52, %c0_53, %c0_54, %c38] : memref<1x1x4x166xbf16, #tpu.memory_space<vmem>>, vector<1x1x4x128xbf16>
    %50 = vector.shape_cast %49 : vector<1x1x4x128xbf16> to vector<4x128xbf16>
    %cst_55 = arith.constant dense<0.000000e+00> : vector<8x128xf32>
    %51 = tpu.matmul %48, %50, %cst_55 {dimension_numbers = #tpu.dot_dimension_numbers<[1], [0], [0], [1], [0, 0, 1, 1], [], []>} : vector<8x4xbf16>, vector<4x128xbf16>, vector<8x128xf32> -> vector<8x128xf32>
    %52 = arith.addf %46, %51 : vector<8x128xf32>
    %53 = arith.index_cast %arg1 : i32 to index
    %c0_56 = arith.constant 0 : index
    %c0_57 = arith.constant 0 : index
    %54 = vector.load %arg6[%53, %c0_56, %c0_57] : memref<3x8x128xf32, #tpu.memory_space<vmem>>, vector<1x8x128xf32>
    %55 = vector.shape_cast %54 : vector<1x8x128xf32> to vector<8x128xf32>
    %56 = vector.shape_cast %52 : vector<8x128xf32> to vector<1x8x128xf32>
    tpu.vector_store %arg6[%53, %c0_56, %c0_57], %56 {strides = array<i32>} : memref<3x8x128xf32, #tpu.memory_space<vmem>>, vector<1x8x128xf32>,
    %c2_i32 = arith.constant 2 : i32
    %57 = arith.cmpi eq, %arg1, %c2_i32 : i32
    %58 = arith.extui %57 : i1 to i32
    %c0_i32 = arith.constant 0 : i32
    %59 = arith.cmpi ne, %58, %c0_i32 : i32
    scf.if %59 {
      %cst_58 = arith.constant 0.000000e+00 : f32
      %60 = vector.broadcast %cst_58 : f32 to vector<8x1xf32>
      %c0_59 = arith.constant 0 : index
      %c0_60 = arith.constant 0 : index
      %c0_61 = arith.constant 0 : index
      %61 = vector.load %arg6[%c0_59, %c0_60, %c0_61] : memref<3x8x128xf32, #tpu.memory_space<vmem>>, vector<1x8x128xf32>
      %62 = vector.shape_cast %61 : vector<1x8x128xf32> to vector<8x128xf32>
      %c0_62 = arith.constant 0 : index
      %c0_63 = arith.constant 0 : index
      %c0_64 = arith.constant 0 : index
      %63 = vector.load %arg4[%c0_62, %c0_63, %c0_64] : memref<3x1x128xf32, #tpu.memory_space<vmem>>, vector<1x1x128xf32>
      %64 = vector.shape_cast %63 : vector<1x1x128xf32> to vector<1x128xf32>
      %65 = vector.broadcast %64 : vector<1x128xf32> to vector<8x128xf32>
      %66 = arith.mulf %62, %65 : vector<8x128xf32>
      %cst_65 = arith.constant dense<0.000000e+00> : vector<8xf32>
      %67 = vector.multi_reduction <add>, %66, %cst_65 [1] : vector<8x128xf32> to vector<8xf32>
      %68 = vector.shape_cast %67 : vector<8xf32> to vector<8x1xf32>
      %69 = arith.addf %60, %68 : vector<8x1xf32>
      %c1_66 = arith.constant 1 : index
      %c0_67 = arith.constant 0 : index
      %c0_68 = arith.constant 0 : index
      %70 = vector.load %arg6[%c1_66, %c0_67, %c0_68] : memref<3x8x128xf32, #tpu.memory_space<vmem>>, vector<1x8x128xf32>
      %71 = vector.shape_cast %70 : vector<1x8x128xf32> to vector<8x128xf32>
      %c1_69 = arith.constant 1 : index
      %c0_70 = arith.constant 0 : index
      %c0_71 = arith.constant 0 : index
      %72 = vector.load %arg4[%c1_69, %c0_70, %c0_71] : memref<3x1x128xf32, #tpu.memory_space<vmem>>, vector<1x1x128xf32>
      %73 = vector.shape_cast %72 : vector<1x1x128xf32> to vector<1x128xf32>
      %74 = vector.broadcast %73 : vector<1x128xf32> to vector<8x128xf32>
      %75 = arith.mulf %71, %74 : vector<8x128xf32>
      %cst_72 = arith.constant dense<0.000000e+00> : vector<8xf32>
      %76 = vector.multi_reduction <add>, %75, %cst_72 [1] : vector<8x128xf32> to vector<8xf32>
      %77 = vector.shape_cast %76 : vector<8xf32> to vector<8x1xf32>
      %78 = arith.addf %69, %77 : vector<8x1xf32>
      %c2_73 = arith.constant 2 : index
      %c0_74 = arith.constant 0 : index
      %c0_75 = arith.constant 0 : index
      %79 = vector.load %arg6[%c2_73, %c0_74, %c0_75] : memref<3x8x128xf32, #tpu.memory_space<vmem>>, vector<1x8x128xf32>
      %80 = vector.shape_cast %79 : vector<1x8x128xf32> to vector<8x128xf32>
      %c2_76 = arith.constant 2 : index
      %c0_77 = arith.constant 0 : index
      %c0_78 = arith.constant 0 : index
      %81 = vector.load %arg4[%c2_76, %c0_77, %c0_78] : memref<3x1x128xf32, #tpu.memory_space<vmem>>, vector<1x1x128xf32>
      %82 = vector.shape_cast %81 : vector<1x1x128xf32> to vector<1x128xf32>
      %83 = vector.broadcast %82 : vector<1x128xf32> to vector<8x128xf32>
      %84 = arith.mulf %80, %83 : vector<8x128xf32>
      %cst_79 = arith.constant dense<0.000000e+00> : vector<8xf32>
      %85 = vector.multi_reduction <add>, %84, %cst_79 [1] : vector<8x128xf32> to vector<8xf32>
      %86 = vector.shape_cast %85 : vector<8xf32> to vector<8x1xf32>
      %87 = arith.addf %78, %86 : vector<8x1xf32>
      %cst_80 = arith.constant 3.906250e-03 : f32
      %88 = vector.broadcast %cst_80 : f32 to vector<8x1xf32>
      %89 = arith.mulf %87, %88 : vector<8x1xf32>
      %cst_81 = arith.constant 0.000000e+00 : f32
      %90 = vector.broadcast %cst_81 : f32 to vector<8x1xf32>
      %c0_82 = arith.constant 0 : index
      %c0_83 = arith.constant 0 : index
      %c0_84 = arith.constant 0 : index
      %91 = vector.load %arg6[%c0_82, %c0_83, %c0_84] : memref<3x8x128xf32, #tpu.memory_space<vmem>>, vector<1x8x128xf32>
      %92 = vector.shape_cast %91 : vector<1x8x128xf32> to vector<8x128xf32>
      %93 = vector.broadcast %89 : vector<8x1xf32> to vector<8x128xf32>
      %94 = arith.subf %92, %93 : vector<8x128xf32>
      %c0_85 = arith.constant 0 : index
      %c0_86 = arith.constant 0 : index
      %c0_87 = arith.constant 0 : index
      %95 = vector.load %arg4[%c0_85, %c0_86, %c0_87] : memref<3x1x128xf32, #tpu.memory_space<vmem>>, vector<1x1x128xf32>
      %96 = vector.shape_cast %95 : vector<1x1x128xf32> to vector<1x128xf32>
      %97 = vector.broadcast %96 : vector<1x128xf32> to vector<8x128xf32>
      %98 = arith.mulf %94, %97 : vector<8x128xf32>
      %99 = arith.mulf %98, %98 : vector<8x128xf32>
      %cst_88 = arith.constant dense<0.000000e+00> : vector<8xf32>
      %100 = vector.multi_reduction <add>, %99, %cst_88 [1] : vector<8x128xf32> to vector<8xf32>
      %101 = vector.shape_cast %100 : vector<8xf32> to vector<8x1xf32>
      %102 = arith.addf %90, %101 : vector<8x1xf32>
      %c1_89 = arith.constant 1 : index
      %c0_90 = arith.constant 0 : index
      %c0_91 = arith.constant 0 : index
      %103 = vector.load %arg6[%c1_89, %c0_90, %c0_91] : memref<3x8x128xf32, #tpu.memory_space<vmem>>, vector<1x8x128xf32>
      %104 = vector.shape_cast %103 : vector<1x8x128xf32> to vector<8x128xf32>
      %105 = vector.broadcast %89 : vector<8x1xf32> to vector<8x128xf32>
      %106 = arith.subf %104, %105 : vector<8x128xf32>
      %c1_92 = arith.constant 1 : index
      %c0_93 = arith.constant 0 : index
      %c0_94 = arith.constant 0 : index
      %107 = vector.load %arg4[%c1_92, %c0_93, %c0_94] : memref<3x1x128xf32, #tpu.memory_space<vmem>>, vector<1x1x128xf32>
      %108 = vector.shape_cast %107 : vector<1x1x128xf32> to vector<1x128xf32>
      %109 = vector.broadcast %108 : vector<1x128xf32> to vector<8x128xf32>
      %110 = arith.mulf %106, %109 : vector<8x128xf32>
      %111 = arith.mulf %110, %110 : vector<8x128xf32>
      %cst_95 = arith.constant dense<0.000000e+00> : vector<8xf32>
      %112 = vector.multi_reduction <add>, %111, %cst_95 [1] : vector<8x128xf32> to vector<8xf32>
      %113 = vector.shape_cast %112 : vector<8xf32> to vector<8x1xf32>
      %114 = arith.addf %102, %113 : vector<8x1xf32>
      %c2_96 = arith.constant 2 : index
      %c0_97 = arith.constant 0 : index
      %c0_98 = arith.constant 0 : index
      %115 = vector.load %arg6[%c2_96, %c0_97, %c0_98] : memref<3x8x128xf32, #tpu.memory_space<vmem>>, vector<1x8x128xf32>
      %116 = vector.shape_cast %115 : vector<1x8x128xf32> to vector<8x128xf32>
      %117 = vector.broadcast %89 : vector<8x1xf32> to vector<8x128xf32>
      %118 = arith.subf %116, %117 : vector<8x128xf32>
      %c2_99 = arith.constant 2 : index
      %c0_100 = arith.constant 0 : index
      %c0_101 = arith.constant 0 : index
      %119 = vector.load %arg4[%c2_99, %c0_100, %c0_101] : memref<3x1x128xf32, #tpu.memory_space<vmem>>, vector<1x1x128xf32>
      %120 = vector.shape_cast %119 : vector<1x1x128xf32> to vector<1x128xf32>
      %121 = vector.broadcast %120 : vector<1x128xf32> to vector<8x128xf32>
      %122 = arith.mulf %118, %121 : vector<8x128xf32>
      %123 = arith.mulf %122, %122 : vector<8x128xf32>
      %cst_102 = arith.constant dense<0.000000e+00> : vector<8xf32>
      %124 = vector.multi_reduction <add>, %123, %cst_102 [1] : vector<8x128xf32> to vector<8xf32>
      %125 = vector.shape_cast %124 : vector<8xf32> to vector<8x1xf32>
      %126 = arith.addf %114, %125 : vector<8x1xf32>
      %cst_103 = arith.constant 3.906250e-03 : f32
      %127 = vector.broadcast %cst_103 : f32 to vector<8x1xf32>
      %128 = arith.mulf %126, %127 : vector<8x1xf32>
      %cst_104 = arith.constant 9.99999974E-6 : f32
      %129 = vector.broadcast %cst_104 : f32 to vector<8x1xf32>
      %130 = arith.addf %128, %129 : vector<8x1xf32>
      %131 = math.rsqrt %130 : vector<8x1xf32>
      %c0_105 = arith.constant 0 : index
      %c0_106 = arith.constant 0 : index
      %c0_107 = arith.constant 0 : index
      %132 = vector.load %arg6[%c0_105, %c0_106, %c0_107] : memref<3x8x128xf32, #tpu.memory_space<vmem>>, vector<1x8x128xf32>
      %133 = vector.shape_cast %132 : vector<1x8x128xf32> to vector<8x128xf32>
      %134 = vector.broadcast %89 : vector<8x1xf32> to vector<8x128xf32>
      %135 = arith.subf %133, %134 : vector<8x128xf32>
      %136 = vector.broadcast %131 : vector<8x1xf32> to vector<8x128xf32>
      %137 = arith.mulf %135, %136 : vector<8x128xf32>
      %cst_108 = arith.constant 0.000000e+00 : f32
      %138 = vector.broadcast %cst_108 : f32 to vector<8x128xf32>
      %139 = arith.maximumf %137, %138 : vector<8x128xf32>
      %c0_109 = arith.constant 0 : index
      %c0_110 = arith.constant 0 : index
      %c0_111 = arith.constant 0 : index
      %140 = vector.load %arg5[%c0_109, %c0_110, %c0_111] : memref<1x8x384xf32, #tpu.memory_space<vmem>>, vector<1x8x128xf32>
      %141 = vector.shape_cast %140 : vector<1x8x128xf32> to vector<8x128xf32>
      %142 = vector.shape_cast %139 : vector<8x128xf32> to vector<1x8x128xf32>
      tpu.vector_store %arg5[%c0_109, %c0_110, %c0_111], %142 {strides = array<i32>} : memref<1x8x384xf32, #tpu.memory_space<vmem>>, vector<1x8x128xf32>,
      %c1_112 = arith.constant 1 : index
      %c0_113 = arith.constant 0 : index
      %c0_114 = arith.constant 0 : index
      %143 = vector.load %arg6[%c1_112, %c0_113, %c0_114] : memref<3x8x128xf32, #tpu.memory_space<vmem>>, vector<1x8x128xf32>
      %144 = vector.shape_cast %143 : vector<1x8x128xf32> to vector<8x128xf32>
      %145 = vector.broadcast %89 : vector<8x1xf32> to vector<8x128xf32>
      %146 = arith.subf %144, %145 : vector<8x128xf32>
      %147 = vector.broadcast %131 : vector<8x1xf32> to vector<8x128xf32>
      %148 = arith.mulf %146, %147 : vector<8x128xf32>
      %cst_115 = arith.constant 0.000000e+00 : f32
      %149 = vector.broadcast %cst_115 : f32 to vector<8x128xf32>
      %150 = arith.maximumf %148, %149 : vector<8x128xf32>
      %c0_116 = arith.constant 0 : index
      %c0_117 = arith.constant 0 : index
      %c128 = arith.constant 128 : index
      %151 = vector.load %arg5[%c0_116, %c0_117, %c128] : memref<1x8x384xf32, #tpu.memory_space<vmem>>, vector<1x8x128xf32>
      %152 = vector.shape_cast %151 : vector<1x8x128xf32> to vector<8x128xf32>
      %153 = vector.shape_cast %150 : vector<8x128xf32> to vector<1x8x128xf32>
      tpu.vector_store %arg5[%c0_116, %c0_117, %c128], %153 {strides = array<i32>} : memref<1x8x384xf32, #tpu.memory_space<vmem>>, vector<1x8x128xf32>,
      %c2_118 = arith.constant 2 : index
      %c0_119 = arith.constant 0 : index
      %c0_120 = arith.constant 0 : index
      %154 = vector.load %arg6[%c2_118, %c0_119, %c0_120] : memref<3x8x128xf32, #tpu.memory_space<vmem>>, vector<1x8x128xf32>
      %155 = vector.shape_cast %154 : vector<1x8x128xf32> to vector<8x128xf32>
      %156 = vector.broadcast %89 : vector<8x1xf32> to vector<8x128xf32>
      %157 = arith.subf %155, %156 : vector<8x128xf32>
      %158 = vector.broadcast %131 : vector<8x1xf32> to vector<8x128xf32>
      %159 = arith.mulf %157, %158 : vector<8x128xf32>
      %cst_121 = arith.constant 0.000000e+00 : f32
      %160 = vector.broadcast %cst_121 : f32 to vector<8x128xf32>
      %161 = arith.maximumf %159, %160 : vector<8x128xf32>
      %c0_122 = arith.constant 0 : index
      %c0_123 = arith.constant 0 : index
      %c256 = arith.constant 256 : index
      %162 = vector.load %arg5[%c0_122, %c0_123, %c256] : memref<1x8x384xf32, #tpu.memory_space<vmem>>, vector<1x8x128xf32>
      %163 = vector.shape_cast %162 : vector<1x8x128xf32> to vector<8x128xf32>
      %164 = vector.shape_cast %161 : vector<8x128xf32> to vector<1x8x128xf32>
      tpu.vector_store %arg5[%c0_122, %c0_123, %c256], %164 {strides = array<i32>} : memref<1x8x384xf32, #tpu.memory_space<vmem>>, vector<1x8x128xf32>,
    } else {
    }
    return
  }
  func.func @transform_0(%arg0: i32, %arg1: i32) -> (i32, i32, i32, i32) {
    %c0_i32 = arith.constant 0 : i32
    %c0_i32_0 = arith.constant 0 : i32
    %c0_i32_1 = arith.constant 0 : i32
    return %arg0, %arg1, %c0_i32, %c0_i32_0 : i32, i32, i32, i32
  }
  func.func @transform_1(%arg0: i32, %arg1: i32) -> (i32, i32, i32) {
    %c0_i32 = arith.constant 0 : i32
    %c0_i32_0 = arith.constant 0 : i32
    %c0_i32_1 = arith.constant 0 : i32
    %c0_i32_2 = arith.constant 0 : i32
    return %c0_i32, %c0_i32_0, %c0_i32_1 : i32, i32, i32
  }
  func.func @transform_2(%arg0: i32, %arg1: i32) -> (i32, i32, i32) {
    %c0_i32 = arith.constant 0 : i32
    %c0_i32_0 = arith.constant 0 : i32
    %c0_i32_1 = arith.constant 0 : i32
    %c0_i32_2 = arith.constant 0 : i32
    return %c0_i32, %c0_i32_0, %c0_i32_1 : i32, i32, i32
  }
  func.func @transform_3(%arg0: i32, %arg1: i32) -> (i32, i32, i32) {
    %c0_i32 = arith.constant 0 : i32
    %c0_i32_0 = arith.constant 0 : i32
    %c0_i32_1 = arith.constant 0 : i32
    return %arg0, %c0_i32, %c0_i32_0 : i32, i32, i32
  }
}

</mosaic_0001>

<llo_original>
// kernel: tpu_custom_call.1
$region0: #{tpu_custom_call.1}
  #allocation0 [shape = 'u32[]', space=smem, size = 0x4, offset = 0x4, fixed_abs, tag = 'smem constant byte address 0x4 - core index']
  #allocation1 [shape = 'u32[72,128]{1,0:T(1,128)}', space=vmem, size = 0x9000, scoped, tag = 'internal scratch']
  #allocation2 [shape = 'f32[3,8,128]{2,1,0:T(8,128)}', space=vmem, size = 0x3000, scoped, tag = 'scratch operand']
  %s0 = inlined_call_operand.vmem [shape: bf16[2,3,4,166], index: 0, kind: input, shape index: {}]
  %s1 = inlined_call_operand.vmem [shape: bf16[9,8,4], index: 1, kind: input, shape index: {}]
  %s2 = inlined_call_operand.vmem [shape: f32[3,1,128], index: 2, kind: input, shape index: {}]
  %s3 = inlined_call_operand.hbm [shape: f32[2,8,384], index: 3, kind: output, shape index: {}]
  %s4 = sld [smem:[#allocation0]]
  $region49: #{tpu_custom_call.1} parent=0
    _
  %s6 = ssub.s32 1, %s4
  %s7 = scalar_select 0, %s6, %s4
  $region1: #{tpu_custom_call.1} parent=0
    #allocation3 [shape = 'u8[24576]{0}', space=vmem, size = 0x6000, scoped, tag = 'output window, operand 0']
    #allocation4 [shape = 's32[2]{0}', space=sflag, size = 0x8, scoped, tag = 'scoped memory for tpu_custom_call.1']
    %8 = vsyncpa [#allocation4], 0
    %s9 = scalar_lea.sflag [#allocation4], 1
    %10 = vsyncpa %s9, 0
    loop: start=0, step=1, limit=8
    $region2: #{tpu_custom_call.1} parent=1 // loop_pre_header
      _
    $region3: #{tpu_custom_call.1} parent=1 // loop_header
      %s12 = sphi 0, %s16
      %p13 = scmp.ge.s32.totalorder %s12, 8
      %s19 = sphi 0, %s31
      %s20 = sphi 0, %s27
      %s21 = sphi 0, %s19
      %s22 = sphi 0, %s20
      %s23 = sphi 0, %s21
      %s24 = sphi 0, %s22
      %s36 = sphi 0, %s38
      %s39 = sphi 0, %s36
      %s40 = sphi 0, %s39
      %s56 = sphi 0, %s40
      %s60 = sphi 0, %s60
      %s62 = sphi 0, %s60
      %s63 = sphi 0, %s62
      %s77 = sphi 0, %s63
      %s81 = sphi 0, %s81
      %s83 = sphi 0, %s81
      %s84 = sphi 0, %s83
      %s98 = sphi 0, %s84
      %s104 = sphi 0, %s106
      %s107 = sphi 0, %s104
      %s108 = sphi 0, %s107
      %s124 = sphi 0, %s108
    $region4: #{tpu_custom_call.1} parent=1 // loop_header_branch
      %15 = sbr.rel (%p13) target = $region8
    $region5: #{tpu_custom_call.1} parent=1 // loop_body
      %s17 = ssub.s32 %s12, 1
      %s18 = ssub.s32 %s12, 2
      %s25 = sadd.s32 1, %s20
      %p26 = scmp.ge.s32.totalorder %s25, 3
      %s27 = scalar_select %p26, 0, %s25
      %s28 = sadd.s32 1, %s19
      %s29 = scalar_select %p26, %s28, %s19
      %p30 = scmp.ge.s32.totalorder %s29, 2
      %s31 = scalar_select %p30, 0, %s29
      %s32 = ssub.s32 %s19, %s31
      %s33 = ssub.s32 %s20, %s27
      %s34 = sor.u32 %s32, %s33
      %p35 = scmp.eq.s32.totalorder %s34, 0
      %s37 = sadd.s32 %s36, 1
      %s38 = scalar_select %p35, %s36, %s37
      %p41 = pneg %p35
      %p42 = scmp.eq.s32.totalorder %s12, 5
      %p43 = por %p41, %p42
      %p44 = scmp.ne.s32.totalorder %s36, %s39
      %p45 = scmp.eq.s32.totalorder %s12, 0
      %p46 = por %p44, %p45
      %p47 = scmp.ne.s32.totalorder %s36, %s39
      %p48 = scmp.eq.s32.totalorder %s17, 5
      %p49 = por %p47, %p48
      %p50 = scmp.ne.s32.totalorder %s39, %s40
      %p51 = scmp.eq.s32.totalorder %s17, 0
      %p52 = por %p50, %p51
      %p53 = scmp.ne.s32.totalorder %s39, %s40
      %p54 = scmp.eq.s32.totalorder %s18, 5
      %p55 = por %p53, %p54
      %p57 = scmp.ne.s32.totalorder %s40, %s56
      %p58 = scmp.eq.s32.totalorder %s18, 0
      %p59 = por %p57, %p58
      %s61 = sadd.s32 %s60, 1
      %p64 = scmp.eq.s32.totalorder %s12, 5
      %p65 = scmp.ne.s32.totalorder %s60, %s62
      %p66 = scmp.eq.s32.totalorder %s12, 0
      %p67 = por %p65, %p66
      %p68 = scmp.ne.s32.totalorder %s60, %s62
      %p69 = scmp.eq.s32.totalorder %s17, 5
      %p70 = por %p68, %p69
      %p71 = scmp.ne.s32.totalorder %s62, %s63
      %p72 = scmp.eq.s32.totalorder %s17, 0
      %p73 = por %p71, %p72
      %p74 = scmp.ne.s32.totalorder %s62, %s63
      %p75 = scmp.eq.s32.totalorder %s18, 5
      %p76 = por %p74, %p75
      %p78 = scmp.ne.s32.totalorder %s63, %s77
      %p79 = scmp.eq.s32.totalorder %s18, 0
      %p80 = por %p78, %p79
      %s82 = sadd.s32 %s81, 1
      %p85 = scmp.eq.s32.totalorder %s12, 5
      %p86 = scmp.ne.s32.totalorder %s81, %s83
      %p87 = scmp.eq.s32.totalorder %s12, 0
      %p88 = por %p86, %p87
      %p89 = scmp.ne.s32.totalorder %s81, %s83
      %p90 = scmp.eq.s32.totalorder %s17, 5
      %p91 = por %p89, %p90
      %p92 = scmp.ne.s32.totalorder %s83, %s84
      %p93 = scmp.eq.s32.totalorder %s17, 0
      %p94 = por %p92, %p93
      %p95 = scmp.ne.s32.totalorder %s83, %s84
      %p96 = scmp.eq.s32.totalorder %s18, 5
      %p97 = por %p95, %p96
      %p99 = scmp.ne.s32.totalorder %s84, %s98
      %p100 = scmp.eq.s32.totalorder %s18, 0
      %p101 = por %p99, %p100
      %s102 = ssub.s32 %s19, %s31
      %p103 = scmp.eq.s32.totalorder %s102, 0
      %s105 = sadd.s32 %s104, 1
      %s106 = scalar_select %p103, %s104, %s105
      %p109 = pneg %p103
      %p110 = scmp.eq.s32.totalorder %s12, 5
      %p111 = por %p109, %p110
      %p112 = scmp.ne.s32.totalorder %s104, %s107
      %p113 = scmp.eq.s32.totalorder %s12, 0
      %p114 = por %p112, %p113
      %p115 = scmp.ne.s32.totalorder %s104, %s107
      %p116 = scmp.eq.s32.totalorder %s17, 5
      %p117 = por %p115, %p116
      %p118 = scmp.ne.s32.totalorder %s107, %s108
      %p119 = scmp.eq.s32.totalorder %s17, 0
      %p120 = por %p118, %p119
      %p121 = scmp.ne.s32.totalorder %s107, %s108
      %p122 = scmp.eq.s32.totalorder %s18, 5
      %p123 = por %p121, %p122
      %p125 = scmp.ne.s32.totalorder %s108, %s124
      %p126 = scmp.eq.s32.totalorder %s18, 0
      %p127 = por %p125, %p126
      %p128 = scmp.le.s32.totalorder 1, %s12
      %p129 = scmp.lt.s32.totalorder %s12, 7
      %p130 = pnand %p128, %p129
      %p131 = pneg %p130
      // Predicated region
      $region9: #{tpu_custom_call.1} parent=5 // pred_check
        _
      $region10: #{tpu_custom_call.1} parent=5 // pred_check_branch
        %133 = sbr.rel (%p130) target = $region12
      $region11: #{tpu_custom_call.1} parent=5 // pred_region
        %s134 = ssub.s32 %s12, 1
        // Predicated region
        $region13: #{tpu_custom_call.1} parent=11 // pred_check
          %p135 = pneg %p73
        $region14: #{tpu_custom_call.1} parent=11 // pred_check_branch
          %137 = sbr.rel (%p135) target = $region16
        $region15: #{tpu_custom_call.1} parent=11 // pred_region
          _
        $region16: #{tpu_custom_call.1} parent=11 // pred_fallthru
          _
        // Predicated region
        $region17: #{tpu_custom_call.1} parent=11 // pred_check
          %p138 = pneg %p94
        $region18: #{tpu_custom_call.1} parent=11 // pred_check_branch
          %140 = sbr.rel (%p138) target = $region20
        $region19: #{tpu_custom_call.1} parent=11 // pred_region
          _
        $region20: #{tpu_custom_call.1} parent=11 // pred_fallthru
          _
      $region12: #{tpu_custom_call.1} parent=5 // pred_fallthru
        _
      %p141 = scmp.lt.s32.totalorder %s12, 6
      // Predicated region
      $region21: #{tpu_custom_call.1} parent=5 // pred_check
        %p142 = pneg %p141
      $region22: #{tpu_custom_call.1} parent=5 // pred_check_branch
        %144 = sbr.rel (%p142) target = $region24
      $region23: #{tpu_custom_call.1} parent=5 // pred_region
        // Predicated region
        $region25: #{tpu_custom_call.1} parent=23 // pred_check
          %p145 = pneg %p46
        $region26: #{tpu_custom_call.1} parent=23 // pred_check_branch
          %147 = sbr.rel (%p145) target = $region28
        $region27: #{tpu_custom_call.1} parent=23 // pred_region
          %p148 = scmp.lt.s32.totalorder %s19, 1
          %s149 = scalar_select %p148, %s19, 1
          %p150 = scmp.lt.s32.totalorder %s20, 2
          %s151 = scalar_select %p150, %s20, 2
          %s152 = smul.addr %s151, 2
          %s153 = smul.addr %s149, 6
          %s154 = sadd.s32 %s152, %s153
          %s155 = smul.addr %s154, 2
          %s156 = scalar_lea.vmem %s0, %s155
        $region28: #{tpu_custom_call.1} parent=23 // pred_fallthru
          _
      $region24: #{tpu_custom_call.1} parent=5 // pred_fallthru
        _
      %p157 = scmp.le.s32.totalorder 1, %s12
      %p158 = scmp.lt.s32.totalorder %s12, 7
      %p159 = pnand %p157, %p158
      %p160 = pneg %p159
      // Predicated region
      $region29: #{tpu_custom_call.1} parent=5 // pred_check
        _
      $region30: #{tpu_custom_call.1} parent=5 // pred_check_branch
        %162 = sbr.rel (%p159) target = $region32
      $region31: #{tpu_custom_call.1} parent=5 // pred_region
        %s163 = ssub.s32 %s12, 1
        %p164 = scmp.lt.s32.totalorder %s21, 1
        %s165 = scalar_select %p164, %s21, 1
        %p166 = scmp.lt.s32.totalorder %s22, 2
        %s167 = scalar_select %p166, %s22, 2
        %s168 = smul.addr %s167, 2
        %s169 = smul.addr %s165, 6
        %s170 = sadd.s32 %s168, %s169
        %s171 = smul.addr %s170, 2
        %s172 = scalar_lea.vmem %s0, %s171
        %p173 = pneg %p52
        %p174 = pneg %p49
        %p175 = pneg %p73
        %p176 = pneg %p70
        %p177 = pneg %p94
        %p178 = pneg %p91
        %p179 = pneg %p120
        %p180 = pneg %p117
        %s181 = sand.u32 %s107, 1
        %s182 = scalar_lea.sflag [#allocation4], %s181
        %s183 = sand.u32 %s107, 1
        %s184 = smul.addr %s183, 24
        %s185 = scalar_lea.vmem [#allocation3], %s184
        %p186 = scmp.lt.s32.totalorder %s21, 1
        %s187 = scalar_select %p186, %s21, 1
        %p188 = scmp.lt.s32.totalorder %s22, 2
        %s189 = scalar_select %p188, %s22, 2
        %s190 = smul.addr %s189, 2
        %s191 = smul.addr %s187, 6
        %s192 = sadd.s32 %s190, %s191
        %s193 = smul.addr %s192, 2
        %s194 = scalar_lea.vmem %s0, %s193
        %v196 = vld [vmem:[%s1] sm:$0xf]
        %v197 = vld [vmem:[%s194] sm:$0x3]
        %s198 = scalar_lea.vmem %s1, 4
        %v199 = vld [vmem:[%s198] sm:$0xf]
        %v200 = vld [vmem:[%s194] sm:$0xf]
        %202 = vst [vmem:[#allocation1] ss:$4 sm:$0xff] %v200
        %v203 = vld.sshfl [vmem:[#allocation1] sm:$0xff pattern:$0x73625140]
        %v205 = vld.sshfl [vmem:[#allocation1 + $0x8] sm:$0xff pattern:$0x73625140]
        %207 = vrot.lane.b32.xlu0 %v203, 127
        %v208 = vpop.permute.xlu0 %207
        %209 = vrot.lane.b32.xlu0 %v205, 127
        %v210 = vpop.permute.xlu0 %209
        %vm211 = vcmask 1039360
        %v212 = vsel %vm211, %v208, %v210
        %vm213 = vcmask 31744
        %v215 = vsel %vm213, %v199, 0
        %vm217 = vcmask 1041408
        %v219 = vsel %vm217, %v212, 0
        %221 = vmatpush.bf16.msra.mxu0 0
        %222 = vmatpush.bf16.msra.mxu0 0
        %223 = vmatpush.bf16.msra.mxu0 0
        %224 = vmatpush.bf16.msra.mxu0 0
        %225 = vmatpush.bf16.msra.mxu0 0
        %226 = vmatpush.bf16.msra.mxu0 0
        %227 = vmatpush.bf16.msra.mxu0 0
        %228 = vmatpush.bf16.msra.mxu0 %v219
        %229 = vmatmul.bf16.gmra.mxu0 %v215
        %v230 = vpop.f32.mrf.mxu0
        %v231 = vadd.f32 0.0, %v230
        %v232 = vpop.f32.mrf.mxu0
        %233 = vdwg.mxu0
        %v235 = vsel %vm213, %v196, 0
        %v238 = vsel %vm217, %v197, 0
        %240 = vmatpush.bf16.msra.mxu0 0
        %241 = vmatpush.bf16.msra.mxu0 0
        %242 = vmatpush.bf16.msra.mxu0 0
        %243 = vmatpush.bf16.msra.mxu0 0
        %244 = vmatpush.bf16.msra.mxu0 0
        %245 = vmatpush.bf16.msra.mxu0 0
        %246 = vmatpush.bf16.msra.mxu0 0
        %247 = vmatpush.bf16.msra.mxu0 %v238
        %248 = vmatmul.bf16.gmra.mxu0 %v235
        %v249 = vpop.f32.mrf.mxu0
        %v250 = vadd.f32 %v231, %v249
        %v251 = vpop.f32.mrf.mxu0
        %252 = vdwg.mxu0
        %s253 = scalar_lea.vmem %s1, 8
        %v254 = vld [vmem:[%s253] sm:$0xf]
        %v255 = vld [vmem:[%s194] sm:$0xf]
        %257 = vst [vmem:[#allocation1] ss:$4 sm:$0xff] %v255
        %v258 = vld.sshfl [vmem:[#allocation1] sm:$0xff pattern:$0x73625140]
        %v260 = vld.sshfl [vmem:[#allocation1 + $0x8] sm:$0xff pattern:$0x73625140]
        %262 = vrot.lane.b32.xlu0 %v258, 126
        %v263 = vpop.permute.xlu0 %262
        %264 = vrot.lane.b32.xlu0 %v260, 126
        %v265 = vpop.permute.xlu0 %264
        %vm266 = vcmask 1031168
        %v267 = vsel %vm266, %v263, %v265
        %v269 = vsel %vm213, %v254, 0
        %v272 = vsel %vm217, %v267, 0
        %274 = vmatpush.bf16.msra.mxu0 0
        %275 = vmatpush.bf16.msra.mxu0 0
        %276 = vmatpush.bf16.msra.mxu0 0
        %277 = vmatpush.bf16.msra.mxu0 0
        %278 = vmatpush.bf16.msra.mxu0 0
        %279 = vmatpush.bf16.msra.mxu0 0
        %280 = vmatpush.bf16.msra.mxu0 0
        %281 = vmatpush.bf16.msra.mxu0 %v272
        %282 = vmatmul.bf16.gmra.mxu0 %v269
        %v283 = vpop.f32.mrf.mxu0
        %v284 = vadd.f32 0.0, %v283
        %v285 = vpop.f32.mrf.mxu0
        %286 = vdwg.mxu0
        %v287 = vadd.f32 %v250, %v284
        %s288 = scalar_lea.vmem %s1, 12
        %v289 = vld [vmem:[%s288] sm:$0xf]
        %v290 = vld [vmem:[%s194] sm:$0xf]
        %292 = vst [vmem:[#allocation1] ss:$4 sm:$0xff] %v290
        %v293 = vld.sshfl [vmem:[#allocation1] sm:$0xff pattern:$0x73625140]
        %v295 = vld.sshfl [vmem:[#allocation1 + $0x8] sm:$0xff pattern:$0x73625140]
        %297 = vrot.lane.b32.xlu0 %v293, 110
        %v298 = vpop.permute.xlu0 %297
        %299 = vrot.lane.b32.xlu0 %v295, 110
        %v300 = vpop.permute.xlu0 %299
        %vm301 = vcmask 900096
        %v302 = vsel %vm301, %v298, %v300
        %v304 = vsel %vm213, %v289, 0
        %v307 = vsel %vm217, %v302, 0
        %309 = vmatpush.bf16.msra.mxu0 0
        %310 = vmatpush.bf16.msra.mxu0 0
        %311 = vmatpush.bf16.msra.mxu0 0
        %312 = vmatpush.bf16.msra.mxu0 0
        %313 = vmatpush.bf16.msra.mxu0 0
        %314 = vmatpush.bf16.msra.mxu0 0
        %315 = vmatpush.bf16.msra.mxu0 0
        %316 = vmatpush.bf16.msra.mxu0 %v307
        %317 = vmatmul.bf16.gmra.mxu0 %v304
        %v318 = vpop.f32.mrf.mxu0
        %v319 = vadd.f32 0.0, %v318
        %v320 = vpop.f32.mrf.mxu0
        %321 = vdwg.mxu0
        %v322 = vadd.f32 %v287, %v319
        %s323 = scalar_lea.vmem %s1, 16
        %v324 = vld [vmem:[%s323] sm:$0xf]
        %v325 = vld [vmem:[%s194] sm:$0xf]
        %327 = vst [vmem:[#allocation1] ss:$4 sm:$0xff] %v325
        %v328 = vld.sshfl [vmem:[#allocation1] sm:$0xff pattern:$0x73625140]
        %v330 = vld.sshfl [vmem:[#allocation1 + $0x8] sm:$0xff pattern:$0x73625140]
        %332 = vrot.lane.b32.xlu0 %v328, 109
        %v333 = vpop.permute.xlu0 %332
        %334 = vrot.lane.b32.xlu0 %v330, 109
        %v335 = vpop.permute.xlu0 %334
        %vm336 = vcmask 891904
        %v337 = vsel %vm336, %v333, %v335
        %v339 = vsel %vm213, %v324, 0
        %v342 = vsel %vm217, %v337, 0
        %344 = vmatpush.bf16.msra.mxu0 0
        %345 = vmatpush.bf16.msra.mxu0 0
        %346 = vmatpush.bf16.msra.mxu0 0
        %347 = vmatpush.bf16.msra.mxu0 0
        %348 = vmatpush.bf16.msra.mxu0 0
        %349 = vmatpush.bf16.msra.mxu0 0
        %350 = vmatpush.bf16.msra.mxu0 0
        %351 = vmatpush.bf16.msra.mxu0 %v342
        %352 = vmatmul.bf16.gmra.mxu0 %v339
        %v353 = vpop.f32.mrf.mxu0
        %v354 = vadd.f32 0.0, %v353
        %v355 = vpop.f32.mrf.mxu0
        %356 = vdwg.mxu0
        %v357 = vadd.f32 %v322, %v354
        %s358 = scalar_lea.vmem %s1, 20
        %v359 = vld [vmem:[%s358] sm:$0xf]
        %v360 = vld [vmem:[%s194] sm:$0xf]
        %362 = vst [vmem:[#allocation1] ss:$4 sm:$0xff] %v360
        %v363 = vld.sshfl [vmem:[#allocation1] sm:$0xff pattern:$0x73625140]
        %v365 = vld.sshfl [vmem:[#allocation1 + $0x8] sm:$0xff pattern:$0x73625140]
        %367 = vrot.lane.b32.xlu0 %v363, 108
        %v368 = vpop.permute.xlu0 %367
        %369 = vrot.lane.b32.xlu0 %v365, 108
        %v370 = vpop.permute.xlu0 %369
        %vm371 = vcmask 883712
        %v372 = vsel %vm371, %v368, %v370
        %v374 = vsel %vm213, %v359, 0
        %v377 = vsel %vm217, %v372, 0
        %379 = vmatpush.bf16.msra.mxu0 0
        %380 = vmatpush.bf16.msra.mxu0 0
        %381 = vmatpush.bf16.msra.mxu0 0
        %382 = vmatpush.bf16.msra.mxu0 0
        %383 = vmatpush.bf16.msra.mxu0 0
        %384 = vmatpush.bf16.msra.mxu0 0
        %385 = vmatpush.bf16.msra.mxu0 0
        %386 = vmatpush.bf16.msra.mxu0 %v377
        %387 = vmatmul.bf16.gmra.mxu0 %v374
        %v388 = vpop.f32.mrf.mxu0
        %v389 = vadd.f32 0.0, %v388
        %v390 = vpop.f32.mrf.mxu0
        %391 = vdwg.mxu0
        %v392 = vadd.f32 %v357, %v389
        %s393 = scalar_lea.vmem %s1, 24
        %v394 = vld [vmem:[%s393] sm:$0xf]
        %v395 = vld [vmem:[%s194] sm:$0xf]
        %397 = vst [vmem:[#allocation1] ss:$4 sm:$0xff] %v395
        %v398 = vld.sshfl [vmem:[#allocation1] sm:$0xff pattern:$0x73625140]
        %v400 = vld.sshfl [vmem:[#allocation1 + $0x8] sm:$0xff pattern:$0x73625140]
        %402 = vrot.lane.b32.xlu0 %v398, 92
        %v403 = vpop.permute.xlu0 %402
        %404 = vrot.lane.b32.xlu0 %v400, 92
        %v405 = vpop.permute.xlu0 %404
        %vm406 = vcmask 752640
        %v407 = vsel %vm406, %v403, %v405
        %v409 = vsel %vm213, %v394, 0
        %v412 = vsel %vm217, %v407, 0
        %414 = vmatpush.bf16.msra.mxu0 0
        %415 = vmatpush.bf16.msra.mxu0 0
        %416 = vmatpush.bf16.msra.mxu0 0
        %417 = vmatpush.bf16.msra.mxu0 0
        %418 = vmatpush.bf16.msra.mxu0 0
        %419 = vmatpush.bf16.msra.mxu0 0
        %420 = vmatpush.bf16.msra.mxu0 0
        %421 = vmatpush.bf16.msra.mxu0 %v412
        %422 = vmatmul.bf16.gmra.mxu0 %v409
        %v423 = vpop.f32.mrf.mxu0
        %v424 = vadd.f32 0.0, %v423
        %v425 = vpop.f32.mrf.mxu0
        %426 = vdwg.mxu0
        %v427 = vadd.f32 %v392, %v424
        %s428 = scalar_lea.vmem %s1, 28
        %v429 = vld [vmem:[%s428] sm:$0xf]
        %v430 = vld [vmem:[%s194] sm:$0xf]
        %432 = vst [vmem:[#allocation1] ss:$4 sm:$0xff] %v430
        %v433 = vld.sshfl [vmem:[#allocation1] sm:$0xff pattern:$0x73625140]
        %v435 = vld.sshfl [vmem:[#allocation1 + $0x8] sm:$0xff pattern:$0x73625140]
        %437 = vrot.lane.b32.xlu0 %v433, 91
        %v438 = vpop.permute.xlu0 %437
        %439 = vrot.lane.b32.xlu0 %v435, 91
        %v440 = vpop.permute.xlu0 %439
        %vm441 = vcmask 744448
        %v442 = vsel %vm441, %v438, %v440
        %v444 = vsel %vm213, %v429, 0
        %v447 = vsel %vm217, %v442, 0
        %449 = vmatpush.bf16.msra.mxu0 0
        %450 = vmatpush.bf16.msra.mxu0 0
        %451 = vmatpush.bf16.msra.mxu0 0
        %452 = vmatpush.bf16.msra.mxu0 0
        %453 = vmatpush.bf16.msra.mxu0 0
        %454 = vmatpush.bf16.msra.mxu0 0
        %455 = vmatpush.bf16.msra.mxu0 0
        %456 = vmatpush.bf16.msra.mxu0 %v447
        %457 = vmatmul.bf16.gmra.mxu0 %v444
        %v458 = vpop.f32.mrf.mxu0
        %v459 = vadd.f32 0.0, %v458
        %v460 = vpop.f32.mrf.mxu0
        %461 = vdwg.mxu0
        %v462 = vadd.f32 %v427, %v459
        %s463 = scalar_lea.vmem %s1, 32
        %v464 = vld [vmem:[%s463] sm:$0xf]
        %v465 = vld [vmem:[%s194] sm:$0xf]
        %467 = vst [vmem:[#allocation1] ss:$4 sm:$0xff] %v465
        %v468 = vld.sshfl [vmem:[#allocation1] sm:$0xff pattern:$0x73625140]
        %v470 = vld.sshfl [vmem:[#allocation1 + $0x8] sm:$0xff pattern:$0x73625140]
        %472 = vrot.lane.b32.xlu0 %v468, 90
        %v473 = vpop.permute.xlu0 %472
        %474 = vrot.lane.b32.xlu0 %v470, 90
        %v475 = vpop.permute.xlu0 %474
        %vm476 = vcmask 736256
        %v477 = vsel %vm476, %v473, %v475
        %v479 = vsel %vm213, %v464, 0
        %v482 = vsel %vm217, %v477, 0
        %484 = vmatpush.bf16.msra.mxu0 0
        %485 = vmatpush.bf16.msra.mxu0 0
        %486 = vmatpush.bf16.msra.mxu0 0
        %487 = vmatpush.bf16.msra.mxu0 0
        %488 = vmatpush.bf16.msra.mxu0 0
        %489 = vmatpush.bf16.msra.mxu0 0
        %490 = vmatpush.bf16.msra.mxu0 0
        %491 = vmatpush.bf16.msra.mxu0 %v482
        %492 = vmatmul.bf16.gmra.mxu0 %v479
        %v493 = vpop.f32.mrf.mxu0
        %v494 = vadd.f32 0.0, %v493
        %v495 = vpop.f32.mrf.mxu0
        %496 = vdwg.mxu0
        %v497 = vadd.f32 %v462, %v494
        %s498 = smul.u32 %s22, 8
        %s499 = scalar_lea.vmem [#allocation2], %s498
        %500 = vst [vmem:[%s499] sm:$0xff] %v497
        %p501 = scmp.eq.s32.totalorder %s22, 2
        // Predicated region
        $region33: #{tpu_custom_call.1} parent=31 // pred_check
          %p502 = pneg %p501
        $region34: #{tpu_custom_call.1} parent=31 // pred_check_branch
          %504 = sbr.rel (%p502) target = $region36
        $region35: #{tpu_custom_call.1} parent=31 // pred_region
          %v505 = vld [vmem:[#allocation2] sm:$0xff]
          %v506 = vld [vmem:[%s2] sm:$0x1]
          %v508 = vperm.slane %v506, 0
          %v510 = vmul.f32 %v505, %v508
          %511 = vadd.xlane.f32.xlu0 %v510
          %v512 = vpop.xlane.xlu0 %511
          %v513 = vadd.f32 %v512, 0.0
          %s514 = scalar_lea.vmem [#allocation2], 8
          %v515 = vld [vmem:[%s514] sm:$0xff]
          %s516 = scalar_lea.vmem %s2, 1
          %v517 = vld [vmem:[%s516] sm:$0x1]
          %v519 = vperm.slane %v517, 0
          %v521 = vmul.f32 %v515, %v519
          %522 = vadd.xlane.f32.xlu0 %v521
          %v523 = vpop.xlane.xlu0 %522
          %v524 = vadd.f32 %v513, %v523
          %s525 = scalar_lea.vmem [#allocation2], 16
          %v526 = vld [vmem:[%s525] sm:$0xff]
          %s527 = scalar_lea.vmem %s2, 2
          %v528 = vld [vmem:[%s527] sm:$0x1]
          %v530 = vperm.slane %v528, 0
          %v532 = vmul.f32 %v526, %v530
          %533 = vadd.xlane.f32.xlu0 %v532
          %v534 = vpop.xlane.xlu0 %533
          %v535 = vadd.f32 %v524, %v534
          %v536 = vmul.f32 %v535, 0.00390625
          %v537 = vsub.f32 %v505, %v536
          %v538 = vmul.f32 %v537, %v508
          %v539 = vmul.f32 %v538, %v538
          %540 = vadd.xlane.f32.xlu0 %v539
          %v541 = vpop.xlane.xlu0 %540
          %v542 = vadd.f32 %v541, 0.0
          %v543 = vsub.f32 %v515, %v536
          %v544 = vmul.f32 %v543, %v519
          %v545 = vmul.f32 %v544, %v544
          %546 = vadd.xlane.f32.xlu0 %v545
          %v547 = vpop.xlane.xlu0 %546
          %v548 = vadd.f32 %v542, %v547
          %v549 = vsub.f32 %v526, %v536
          %v550 = vmul.f32 %v549, %v530
          %v551 = vmul.f32 %v550, %v550
          %552 = vadd.xlane.f32.xlu0 %v551
          %v553 = vpop.xlane.xlu0 %552
          %v554 = vadd.f32 %v548, %v553
          %v555 = vmul.f32 %v554, 0.00390625
          %v556 = vadd.f32 %v555, 1e-05
          %v557 = vrsqrt.pop %v556
          %v558 = vmul.f32 %v557, %v556
          %v559 = vmul.f32 %v558, %v557
          %v560 = vmul.f32 0.5, %v559
          %v561 = vsub.f32 1.5, %v560
          %v562 = vmul.f32 %v557, %v561
          %vm563 = vweird.f32 %v556
          %vm564 = vweird.f32 %v557
          %vm565 = vmor %vm563, %vm564
          %v566 = vsel %vm565, %v557, %v562
          %v567 = vmul.f32 %v537, %v566
          %v568 = vmax.f32 %v567, 0.0
          %569 = vst [vmem:[%s185] sm:$0xff] %v568
          %v570 = vld [vmem:[%s514] sm:$0xff]
          %v571 = vsub.f32 %v570, %v536
          %v572 = vmul.f32 %v571, %v566
          %v573 = vmax.f32 %v572, 0.0
          %574 = vst [vmem:[%s185 + $0x8] sm:$0xff] %v573
          %v575 = vld [vmem:[%s525] sm:$0xff]
          %v576 = vsub.f32 %v575, %v536
          %v577 = vmul.f32 %v576, %v566
          %v578 = vmax.f32 %v577, 0.0
          %579 = vst [vmem:[%s185 + $0x10] sm:$0xff] %v578
        $region36: #{tpu_custom_call.1} parent=31 // pred_fallthru
          _
        %s580 = sand.u32 %s107, 1
        %s581 = scalar_lea.sflag [#allocation4], %s580
        %s582 = sand.u32 %s107, 1
        %s583 = smul.addr %s582, 24
        %s584 = scalar_lea.vmem [#allocation3], %s583
        // Predicated region
        $region37: #{tpu_custom_call.1} parent=31 // pred_check
          %p585 = pneg %p117
        $region38: #{tpu_custom_call.1} parent=31 // pred_check_branch
          %587 = sbr.rel (%p585) target = $region40
        $region39: #{tpu_custom_call.1} parent=31 // pred_region
          %589 = vsyncadd %s581, 0
          %s590 = smul.addr %s21, 3
          %s591 = smul.addr %s590, 8
          %s592 = scalar_lea.hbm %s3, %s591
          %s594 = sshll.u32 %s584, 4
          %s595 = int_to_ptr.vmem [resolvable:$true] %s594
          %s596 = sshll.u32 %s592, 4
          %s597 = int_to_ptr.hbm [resolvable:$true] %s596
          %599 = dma.vmem_to_hbm [thread:$0]  %s595, 384, %s597, %s581
        $region40: #{tpu_custom_call.1} parent=31 // pred_fallthru
          _
      $region32: #{tpu_custom_call.1} parent=5 // pred_fallthru
        _
      %p600 = scmp.le.s32.totalorder 2, %s12
      // Predicated region
      $region41: #{tpu_custom_call.1} parent=5 // pred_check
        %p601 = pneg %p600
      $region42: #{tpu_custom_call.1} parent=5 // pred_check_branch
        %603 = sbr.rel (%p601) target = $region44
      $region43: #{tpu_custom_call.1} parent=5 // pred_region
        %s604 = ssub.s32 %s12, 2
        // Predicated region
        $region45: #{tpu_custom_call.1} parent=43 // pred_check
          %p605 = pneg %p123
        $region46: #{tpu_custom_call.1} parent=43 // pred_check_branch
          %607 = sbr.rel (%p605) target = $region48
        $region47: #{tpu_custom_call.1} parent=43 // pred_region
          %s608 = sand.u32 %s108, 1
          %s609 = scalar_lea.sflag [#allocation4], %s608
          %s610 = sand.u32 %s108, 1
          %s611 = smul.addr %s610, 24
          %s612 = scalar_lea.vmem [#allocation3], %s611
          %614 = dma.done %s609, 384
        $region48: #{tpu_custom_call.1} parent=43 // pred_fallthru
          _
      $region44: #{tpu_custom_call.1} parent=5 // pred_fallthru
        _
    $region6: #{tpu_custom_call.1} parent=1 // loop_footer
      %s16 = sadd.s32 1, %s12
    $region7: #{tpu_custom_call.1} parent=1 // loop_footer_branch
      %11 = sbr.rel target = $region3
    $region8: #{tpu_custom_call.1} parent=1 // loop_exit
      _
    %615 = vsyncpa [#allocation4], 1
    %s616 = scalar_lea.sflag [#allocation4], 1
    %617 = vsyncpa %s616, 1

</llo_original>
